<compile_context>
chip_gen: v7x
topology: tpu7x:2x2x1
jax: 0.10.0
libtpu: 0.0.40
codegen_flags: <defaults>
</compile_context>

<pallas_src>
import functools

import jax
import jax.numpy as jnp
from jax import lax
from jax.experimental import pallas as pl
from jax.experimental.pallas import tpu as pltpu


# ----------------------------- Pallas kernel --------------------------------
def conv_transpose_gemm_kernel(p_ref, w_ref, o_ref):
    # p_ref: (M_blk, KKpad)      im2col patches for this block of output pixels
    # w_ref: (KKpad, Cout_pad)   flipped + flattened weight (lane-padded to 128)
    # o_ref: (M_blk, Cout_pad)
    o_ref[...] = jnp.dot(
        p_ref[...], w_ref[...], preferred_element_type=jnp.float32
    ).astype(o_ref.dtype)


# --------------------------- One-time weight prep ----------------------------
def prepare_weight(weight_torch):
    """Flip + flatten + pad the ConvTranspose2d weight once, outside the hot path.

    weight_torch: (Cin, Cout, K, K)  (PyTorch ConvTranspose2d layout)
    returns:      (KKpad, Cout_pad)  with KKpad = ceil(K*K*Cin / 128) * 128,
                                          Cout_pad = ceil(Cout / 128) * 128
    """
    cin, cout, k, k2 = weight_torch.shape
    assert k == k2
    kk_cin = k * k * cin
    kk_pad = ((kk_cin + 127) // 128) * 128
    cout_pad = ((cout + 127) // 128) * 128
    # [kh, kw, ci, co] = weight[ci, co, K-1-kh, K-1-kw]  (matches tap order below)
    w_flip = jnp.transpose(weight_torch[:, :, ::-1, ::-1], (2, 3, 0, 1))
    w_mat = w_flip.reshape(kk_cin, cout)
    w_mat = jnp.pad(w_mat, ((0, kk_pad - kk_cin), (0, cout_pad - cout)))
    return w_mat


def _num_m_blocks():
    """2 grid steps only on dual-TensorCore v7x; 1 on single-TC v5e/v6e."""
    try:
        kind = jax.devices()[0].device_kind.lower()
    except Exception:  # pragma: no cover - conservative fallback
        return 1
    return 2 if ("v7" in kind or "7x" in kind) else 1


# ------------------------------- Wrapper -------------------------------------
@functools.partial(jax.jit, static_argnames=("k", "cout", "num_blocks"))
def conv_transpose2d_pallas(x_nchw, w_mat, *, k, cout, num_blocks):
    """Transposed 2D conv (stride=1, pad=0, output_pad=0, groups=1, no bias).

    x_nchw: (N, Cin, H, W) float32
    w_mat:  (KKpad, Cout_pad) float32 from prepare_weight()
    returns (N, Cout, H+K-1, W+K-1) float32
    """
    n, cin, h, w = x_nchw.shape
    kk_pad, cout_pad = w_mat.shape
    ho, wo = h + k - 1, w + k - 1
    kk_cin = k * k * cin

    # ---- layout plumbing (fused inside this jit) -----------------------------
    # NCHW -> NHWC, pad spatially by (K-1) on each side ("full" conv input).
    x_nhwc = jnp.transpose(x_nchw, (0, 2, 3, 1))
    x_pad = jnp.pad(x_nhwc, ((0, 0), (k - 1, k - 1), (k - 1, k - 1), (0, 0)))

    # im2col: merged-tap patch matrix, tap order (kh, kw) outer / ci inner.
    taps = [x_pad[:, kh:kh + ho, kw:kw + wo, :]
            for kh in range(k) for kw in range(k)]
    patches = jnp.concatenate(taps, axis=-1).reshape(n * ho * wo, kk_cin)

    # Fold batch into M; pad M so it splits into num_blocks sublane-aligned
    # blocks, and pad K (288 -> 384) so the lane dim is a full vreg multiple.
    m = n * ho * wo
    align = 8 * num_blocks
    m_pad = ((m + align - 1) // align) * align
    m_blk = m_pad // num_blocks
    patches = jnp.pad(patches, ((0, m_pad - m), (0, kk_pad - kk_cin)))

    cost = pl.CostEstimate(
        flops=2 * m_pad * kk_pad * cout_pad,
        transcendentals=0,
        bytes_accessed=4 * (m_pad * kk_pad + kk_pad * cout_pad + m_pad * cout_pad),
    )

    # ---- single deep GEMM in Pallas ------------------------------------------
    out_flat = pl.pallas_call(
        conv_transpose_gemm_kernel,
        out_shape=jax.ShapeDtypeStruct((m_pad, cout_pad), jnp.float32),
        grid_spec=pl.GridSpec(
            grid=(num_blocks,),
            in_specs=[
                pl.BlockSpec((m_blk, kk_pad), lambda i: (i, 0)),
                # constant block index -> weight fetched once, held resident
                pl.BlockSpec((kk_pad, cout_pad), lambda i: (0, 0)),
            ],
            out_specs=pl.BlockSpec((m_blk, cout_pad), lambda i: (i, 0)),
        ),
        compiler_params=pltpu.CompilerParams(
            dimension_semantics=("parallel",),
        ),
        cost_estimate=cost,
    )(patches, w_mat)

    # Drop padding, back to NCHW.
    out_nhwc = out_flat[:m, :cout].reshape(n, ho, wo, cout)
    return jnp.transpose(out_nhwc, (0, 3, 1, 2))


# ------------------------------- Reference -----------------------------------
def conv_transpose2d_ref(x_nchw, weight_torch):
    cin, cout, k, _ = weight_torch.shape
    # Equivalent regular conv with flipped kernel, OIHW = (Cout, Cin, K, K).
    w_conv = jnp.transpose(weight_torch[:, :, ::-1, ::-1], (1, 0, 2, 3))
    return lax.conv_general_dilated(
        x_nchw, w_conv,
        window_strides=(1, 1),
        padding=[(k - 1, k - 1), (k - 1, k - 1)],
        dimension_numbers=("NCHW", "OIHW", "NCHW"),
    )


if __name__ == "__main__":
    # Module constants: in_channels=32, out_channels=64, kernel_size=3,
    # stride=1, padding=0, output_padding=0, groups=1, bias=False.
    batch, in_channels, out_channels, ksize = 2, 32, 64, 3
    height, width = 12, 20  # asymmetric spatial input

    key = jax.random.PRNGKey(0)
    kx, kw = jax.random.split(key)
    x = jax.random.normal(kx, (batch, in_channels, height, width), jnp.float32)
    # PyTorch ConvTranspose2d weight layout: (Cin, Cout, K, K).
    fan_in = in_channels * ksize * ksize
    weight = jax.random.uniform(
        kw, (in_channels, out_channels, ksize, ksize), jnp.float32,
        minval=-1.0, maxval=1.0) / jnp.sqrt(jnp.float32(fan_in))

    # One-time (init-time) weight preprocessing.
    w_mat = jax.block_until_ready(prepare_weight(weight))
    num_blocks = _num_m_blocks()

    out = conv_transpose2d_pallas(
        x, w_mat, k=ksize, cout=out_channels, num_blocks=num_blocks)
    out = jax.block_until_ready(out)

    ref = conv_transpose2d_ref(x, weight)
    assert out.shape == (batch, out_channels, height + ksize - 1, width + ksize - 1)
    assert jnp.allclose(out, ref, atol=1e-4, rtol=1e-4), float(jnp.max(jnp.abs(out - ref)))

    print("KERNEL_OK")
</pallas_src>

<mosaic_0001>
module attributes {stable_mosaic.version = 11 : i64} {
  func.func @conv_transpose_gemm_kernel(%arg0: i32, %arg1: memref<616x384xf32, #tpu.memory_space<vmem>>, %arg2: memref<384x128xf32, #tpu.memory_space<vmem>>, %arg3: memref<616x128xf32, #tpu.memory_space<vmem>>) attributes {dimension_semantics = [#tpu.dimension_semantics<parallel>], iteration_bounds = array<i64: 1>, scalar_prefetch = 0 : i64, scratch_operands = 0 : i64, tpu.core_type = #tpu.core_type<tc>, window_params = [{transform_indices = @transform_0, window_bounds = array<i64: 616, 384>}, {pipeline_mode = #tpu.pipeline_mode<synchronous>, transform_indices = @transform_1, window_bounds = array<i64: 384, 128>}, {transform_indices = @transform_2, window_bounds = array<i64: 616, 128>}]} {
    %c0 = arith.constant 0 : index
    %c0_0 = arith.constant 0 : index
    %0 = vector.load %arg1[%c0, %c0_0] : memref<616x384xf32, #tpu.memory_space<vmem>>, vector<616x384xf32>
    %c0_1 = arith.constant 0 : index
    %c0_2 = arith.constant 0 : index
    %1 = vector.load %arg2[%c0_1, %c0_2] : memref<384x128xf32, #tpu.memory_space<vmem>>, vector<384x128xf32>
    %cst = arith.constant dense<0.000000e+00> : vector<616x128xf32>
    %2 = tpu.matmul %0, %1, %cst {dimension_numbers = #tpu.dot_dimension_numbers<[1], [0], [0], [1], [0, 0, 1, 1], [], []>} : vector<616x384xf32>, vector<384x128xf32>, vector<616x128xf32> -> vector<616x128xf32>
    %c0_3 = arith.constant 0 : index
    %c0_4 = arith.constant 0 : index
    %3 = vector.load %arg3[%c0_3, %c0_4] : memref<616x128xf32, #tpu.memory_space<vmem>>, vector<616x128xf32>
    tpu.vector_store %arg3[%c0_3, %c0_4], %2 {strides = array<i32>} : memref<616x128xf32, #tpu.memory_space<vmem>>, vector<616x128xf32>,
    return
  }
  func.func @transform_0(%arg0: i32) -> (i32, i32) {
    %c0_i32 = arith.constant 0 : i32
    %c0_i32_0 = arith.constant 0 : i32
    return %arg0, %c0_i32 : i32, i32
  }
  func.func @transform_1(%arg0: i32) -> (i32, i32) {
    %c0_i32 = arith.constant 0 : i32
    %c0_i32_0 = arith.constant 0 : i32
    %c0_i32_1 = arith.constant 0 : i32
    return %c0_i32, %c0_i32_0 : i32, i32
  }
  func.func @transform_2(%arg0: i32) -> (i32, i32) {
    %c0_i32 = arith.constant 0 : i32
    %c0_i32_0 = arith.constant 0 : i32
    return %arg0, %c0_i32 : i32, i32
  }
}

</mosaic_0001>

<llo_original>
// kernel: conv_transpose2d_pallas.1
$region0: #{conv_transpose2d_pallas.1}
  #allocation0 [shape = 'u32[]', space=smem, size = 0x4, offset = 0x4, fixed_abs, tag = 'smem constant byte address 0x4 - core index']
  #allocation1 [shape = 'u32[144,128]{1,0:T(1,128)}', space=vmem, size = 0x12000, scoped, tag = 'internal scratch']
  %s0 = inlined_call_operand.vmem [shape: f32[616,384], index: 0, kind: input, shape index: {}]
  %s1 = inlined_call_operand.vmem [shape: f32[384,128], index: 1, kind: input, shape index: {}]
  %s2 = inlined_call_operand.vmem [shape: f32[616,128], index: 2, kind: output, shape index: {}]
  %s3 = sld [smem:[#allocation0]]
  $region18: #{conv_transpose2d_pallas.1} parent=0
    _
  %s5 = ssub.s32 1, %s3
  %s6 = scalar_select 0, %s5, %s3
  // Predicated region
  $region2: #{conv_transpose2d_pallas.1} parent=0 // pred_check
    _
  $region3: #{conv_transpose2d_pallas.1} parent=0 // pred_check_branch
    %8 = sbr.rel (0) target = $region5
  $region4: #{conv_transpose2d_pallas.1} parent=0 // pred_region
    _
  $region5: #{conv_transpose2d_pallas.1} parent=0 // pred_fallthru
    _
  // Predicated region
  $region6: #{conv_transpose2d_pallas.1} parent=0 // pred_check
    _
  $region7: #{conv_transpose2d_pallas.1} parent=0 // pred_check_branch
    %10 = sbr.rel (0) target = $region9
  $region8: #{conv_transpose2d_pallas.1} parent=0 // pred_region
    _
  $region9: #{conv_transpose2d_pallas.1} parent=0 // pred_fallthru
    _
  %v11 = vld [vmem:[%s0] sm:$0xff]
  %v12 = vld [vmem:[%s0 + $0x8] sm:$0xff]
  %v13 = vld [vmem:[%s0 + $0x10] sm:$0xff]
  %v14 = vld [vmem:[%s0 + $0x18] sm:$0xff]
  %v15 = vld [vmem:[%s0 + $0x20] sm:$0xff]
  %v16 = vld [vmem:[%s0 + $0x28] sm:$0xff]
  %v17 = vld [vmem:[%s0 + $0x30] sm:$0xff]
  %v18 = vld [vmem:[%s0 + $0x38] sm:$0xff]
  %v19 = vld [vmem:[%s0 + $0x40] sm:$0xff]
  %v20 = vld [vmem:[%s0 + $0x48] sm:$0xff]
  %v21 = vld [vmem:[%s0 + $0x50] sm:$0xff]
  %v22 = vld [vmem:[%s0 + $0x58] sm:$0xff]
  %v23 = vld [vmem:[%s0 + $0x60] sm:$0xff]
  %v24 = vld [vmem:[%s0 + $0x68] sm:$0xff]
  %v25 = vld [vmem:[%s0 + $0x70] sm:$0xff]
  %v26 = vld [vmem:[%s0 + $0x78] sm:$0xff]
  %v27 = vld [vmem:[%s0 + $0x80] sm:$0xff]
  %v28 = vld [vmem:[%s0 + $0x88] sm:$0xff]
  %v29 = vld [vmem:[%s0 + $0x90] sm:$0xff]
  %v30 = vld [vmem:[%s0 + $0x98] sm:$0xff]
  %v31 = vld [vmem:[%s0 + $0xa0] sm:$0xff]
  %v32 = vld [vmem:[%s0 + $0xa8] sm:$0xff]
  %v33 = vld [vmem:[%s0 + $0xb0] sm:$0xff]
  %v34 = vld [vmem:[%s0 + $0xb8] sm:$0xff]
  %v35 = vld [vmem:[%s0 + $0xc0] sm:$0xff]
  %v36 = vld [vmem:[%s0 + $0xc8] sm:$0xff]
  %v37 = vld [vmem:[%s0 + $0xd0] sm:$0xff]
  %v38 = vld [vmem:[%s0 + $0xd8] sm:$0xff]
  %v39 = vld [vmem:[%s0 + $0xe0] sm:$0xff]
  %v40 = vld [vmem:[%s0 + $0xe8] sm:$0xff]
  %v41 = vld [vmem:[%s0 + $0xf0] sm:$0xff]
  %v42 = vld [vmem:[%s0 + $0xf8] sm:$0xff]
  %v43 = vld [vmem:[%s0 + $0x100] sm:$0xff]
  %v44 = vld [vmem:[%s0 + $0x108] sm:$0xff]
  %v45 = vld [vmem:[%s0 + $0x110] sm:$0xff]
  %v46 = vld [vmem:[%s0 + $0x118] sm:$0xff]
  %v47 = vld [vmem:[%s0 + $0x120] sm:$0xff]
  %v48 = vld [vmem:[%s0 + $0x128] sm:$0xff]
  %v49 = vld [vmem:[%s0 + $0x130] sm:$0xff]
  %v50 = vld [vmem:[%s0 + $0x138] sm:$0xff]
  %v51 = vld [vmem:[%s0 + $0x140] sm:$0xff]
  %v52 = vld [vmem:[%s0 + $0x148] sm:$0xff]
  %v53 = vld [vmem:[%s0 + $0x150] sm:$0xff]
  %v54 = vld [vmem:[%s0 + $0x158] sm:$0xff]
  %v55 = vld [vmem:[%s0 + $0x160] sm:$0xff]
  %v56 = vld [vmem:[%s0 + $0x168] sm:$0xff]
  %v57 = vld [vmem:[%s0 + $0x170] sm:$0xff]
  %v58 = vld [vmem:[%s0 + $0x178] sm:$0xff]
  %v59 = vld [vmem:[%s0 + $0x180] sm:$0xff]
  %v60 = vld [vmem:[%s0 + $0x188] sm:$0xff]
  %v61 = vld [vmem:[%s0 + $0x190] sm:$0xff]
  %v62 = vld [vmem:[%s0 + $0x198] sm:$0xff]
  %v63 = vld [vmem:[%s0 + $0x1a0] sm:$0xff]
  %v64 = vld [vmem:[%s0 + $0x1a8] sm:$0xff]
  %v65 = vld [vmem:[%s0 + $0x1b0] sm:$0xff]
  %v66 = vld [vmem:[%s0 + $0x1b8] sm:$0xff]
  %v67 = vld [vmem:[%s0 + $0x1c0] sm:$0xff]
  %v68 = vld [vmem:[%s0 + $0x1c8] sm:$0xff]
  %v69 = vld [vmem:[%s0 + $0x1d0] sm:$0xff]
  %v70 = vld [vmem:[%s0 + $0x1d8] sm:$0xff]
  %v71 = vld [vmem:[%s0 + $0x1e0] sm:$0xff]
  %v72 = vld [vmem:[%s0 + $0x1e8] sm:$0xff]
  %v73 = vld [vmem:[%s0 + $0x1f0] sm:$0xff]
  %v74 = vld [vmem:[%s0 + $0x1f8] sm:$0xff]
  %v75 = vld [vmem:[%s0 + $0x200] sm:$0xff]
  %v76 = vld [vmem:[%s0 + $0x208] sm:$0xff]
  %v77 = vld [vmem:[%s0 + $0x210] sm:$0xff]
  %v78 = vld [vmem:[%s0 + $0x218] sm:$0xff]
  %v79 = vld [vmem:[%s0 + $0x220] sm:$0xff]
  %v80 = vld [vmem:[%s0 + $0x228] sm:$0xff]
  %v81 = vld [vmem:[%s0 + $0x230] sm:$0xff]
  %v82 = vld [vmem:[%s0 + $0x238] sm:$0xff]
  %v83 = vld [vmem:[%s0 + $0x240] sm:$0xff]
  %v84 = vld [vmem:[%s0 + $0x248] sm:$0xff]
  %v85 = vld [vmem:[%s0 + $0x250] sm:$0xff]
  %v86 = vld [vmem:[%s0 + $0x258] sm:$0xff]
  %v87 = vld [vmem:[%s0 + $0x260] sm:$0xff]
  %v88 = vld [vmem:[%s0 + $0x268] sm:$0xff]
  %v89 = vld [vmem:[%s0 + $0x270] sm:$0xff]
  %v90 = vld [vmem:[%s0 + $0x278] sm:$0xff]
  %v91 = vld [vmem:[%s0 + $0x280] sm:$0xff]
  %v92 = vld [vmem:[%s0 + $0x288] sm:$0xff]
  %v93 = vld [vmem:[%s0 + $0x290] sm:$0xff]
  %v94 = vld [vmem:[%s0 + $0x298] sm:$0xff]
  %v95 = vld [vmem:[%s0 + $0x2a0] sm:$0xff]
  %v96 = vld [vmem:[%s0 + $0x2a8] sm:$0xff]
  %v97 = vld [vmem:[%s0 + $0x2b0] sm:$0xff]
  %v98 = vld [vmem:[%s0 + $0x2b8] sm:$0xff]
  %v99 = vld [vmem:[%s0 + $0x2c0] sm:$0xff]
  %v100 = vld [vmem:[%s0 + $0x2c8] sm:$0xff]
  %v101 = vld [vmem:[%s0 + $0x2d0] sm:$0xff]
  %v102 = vld [vmem:[%s0 + $0x2d8] sm:$0xff]
  %v103 = vld [vmem:[%s0 + $0x2e0] sm:$0xff]
  %v104 = vld [vmem:[%s0 + $0x2e8] sm:$0xff]
  %v105 = vld [vmem:[%s0 + $0x2f0] sm:$0xff]
  %v106 = vld [vmem:[%s0 + $0x2f8] sm:$0xff]
  %v107 = vld [vmem:[%s0 + $0x300] sm:$0xff]
  %v108 = vld [vmem:[%s0 + $0x308] sm:$0xff]
  %v109 = vld [vmem:[%s0 + $0x310] sm:$0xff]
  %v110 = vld [vmem:[%s0 + $0x318] sm:$0xff]
  %v111 = vld [vmem:[%s0 + $0x320] sm:$0xff]
  %v112 = vld [vmem:[%s0 + $0x328] sm:$0xff]
  %v113 = vld [vmem:[%s0 + $0x330] sm:$0xff]
  %v114 = vld [vmem:[%s0 + $0x338] sm:$0xff]
  %v115 = vld [vmem:[%s0 + $0x340] sm:$0xff]
  %v116 = vld [vmem:[%s0 + $0x348] sm:$0xff]
  %v117 = vld [vmem:[%s0 + $0x350] sm:$0xff]
  %v118 = vld [vmem:[%s0 + $0x358] sm:$0xff]
  %v119 = vld [vmem:[%s0 + $0x360] sm:$0xff]
  %v120 = vld [vmem:[%s0 + $0x368] sm:$0xff]
  %v121 = vld [vmem:[%s0 + $0x370] sm:$0xff]
  %v122 = vld [vmem:[%s0 + $0x378] sm:$0xff]
  %v123 = vld [vmem:[%s0 + $0x380] sm:$0xff]
  %v124 = vld [vmem:[%s0 + $0x388] sm:$0xff]
  %v125 = vld [vmem:[%s0 + $0x390] sm:$0xff]
  %v126 = vld [vmem:[%s0 + $0x398] sm:$0xff]
  %v127 = vld [vmem:[%s0 + $0x3a0] sm:$0xff]
  %v128 = vld [vmem:[%s0 + $0x3a8] sm:$0xff]
  %v129 = vld [vmem:[%s0 + $0x3b0] sm:$0xff]
  %v130 = vld [vmem:[%s0 + $0x3b8] sm:$0xff]
  %v131 = vld [vmem:[%s0 + $0x3c0] sm:$0xff]
  %v132 = vld [vmem:[%s0 + $0x3c8] sm:$0xff]
  %v133 = vld [vmem:[%s0 + $0x3d0] sm:$0xff]
  %v134 = vld [vmem:[%s0 + $0x3d8] sm:$0xff]
  %v135 = vld [vmem:[%s0 + $0x3e0] sm:$0xff]
  %v136 = vld [vmem:[%s0 + $0x3e8] sm:$0xff]
  %v137 = vld [vmem:[%s0 + $0x3f0] sm:$0xff]
  %v138 = vld [vmem:[%s0 + $0x3f8] sm:$0xff]
  %v139 = vld [vmem:[%s0 + $0x400] sm:$0xff]
  %v140 = vld [vmem:[%s0 + $0x408] sm:$0xff]
  %v141 = vld [vmem:[%s0 + $0x410] sm:$0xff]
  %v142 = vld [vmem:[%s0 + $0x418] sm:$0xff]
  %v143 = vld [vmem:[%s0 + $0x420] sm:$0xff]
  %v144 = vld [vmem:[%s0 + $0x428] sm:$0xff]
  %v145 = vld [vmem:[%s0 + $0x430] sm:$0xff]
  %v146 = vld [vmem:[%s0 + $0x438] sm:$0xff]
  %v147 = vld [vmem:[%s0 + $0x440] sm:$0xff]
  %v148 = vld [vmem:[%s0 + $0x448] sm:$0xff]
  %v149 = vld [vmem:[%s0 + $0x450] sm:$0xff]
  %v150 = vld [vmem:[%s0 + $0x458] sm:$0xff]
  %v151 = vld [vmem:[%s0 + $0x460] sm:$0xff]
  %v152 = vld [vmem:[%s0 + $0x468] sm:$0xff]
  %v153 = vld [vmem:[%s0 + $0x470] sm:$0xff]
  %v154 = vld [vmem:[%s0 + $0x478] sm:$0xff]
  %v155 = vld [vmem:[%s0 + $0x480] sm:$0xff]
  %v156 = vld [vmem:[%s0 + $0x488] sm:$0xff]
  %v157 = vld [vmem:[%s0 + $0x490] sm:$0xff]
  %v158 = vld [vmem:[%s0 + $0x498] sm:$0xff]
  %v159 = vld [vmem:[%s0 + $0x4a0] sm:$0xff]
  %v160 = vld [vmem:[%s0 + $0x4a8] sm:$0xff]
  %v161 = vld [vmem:[%s0 + $0x4b0] sm:$0xff]
  %v162 = vld [vmem:[%s0 + $0x4b8] sm:$0xff]
  %v163 = vld [vmem:[%s0 + $0x4c0] sm:$0xff]
  %v164 = vld [vmem:[%s0 + $0x4c8] sm:$0xff]
  %v165 = vld [vmem:[%s0 + $0x4d0] sm:$0xff]
  %v166 = vld [vmem:[%s0 + $0x4d8] sm:$0xff]
  %v167 = vld [vmem:[%s0 + $0x4e0] sm:$0xff]
  %v168 = vld [vmem:[%s0 + $0x4e8] sm:$0xff]
  %v169 = vld [vmem:[%s0 + $0x4f0] sm:$0xff]
  %v170 = vld [vmem:[%s0 + $0x4f8] sm:$0xff]
  %v171 = vld [vmem:[%s0 + $0x500] sm:$0xff]
  %v172 = vld [vmem:[%s0 + $0x508] sm:$0xff]
  %v173 = vld [vmem:[%s0 + $0x510] sm:$0xff]
  %v174 = vld [vmem:[%s0 + $0x518] sm:$0xff]
  %v175 = vld [vmem:[%s0 + $0x520] sm:$0xff]
  %v176 = vld [vmem:[%s0 + $0x528] sm:$0xff]
  %v177 = vld [vmem:[%s0 + $0x530] sm:$0xff]
  %v178 = vld [vmem:[%s0 + $0x538] sm:$0xff]
  %v179 = vld [vmem:[%s0 + $0x540] sm:$0xff]
  %v180 = vld [vmem:[%s0 + $0x548] sm:$0xff]
  %v181 = vld [vmem:[%s0 + $0x550] sm:$0xff]
  %v182 = vld [vmem:[%s0 + $0x558] sm:$0xff]
  %v183 = vld [vmem:[%s0 + $0x560] sm:$0xff]
  %v184 = vld [vmem:[%s0 + $0x568] sm:$0xff]
  %v185 = vld [vmem:[%s0 + $0x570] sm:$0xff]
  %v186 = vld [vmem:[%s0 + $0x578] sm:$0xff]
  %v187 = vld [vmem:[%s0 + $0x580] sm:$0xff]
  %v188 = vld [vmem:[%s0 + $0x588] sm:$0xff]
  %v189 = vld [vmem:[%s0 + $0x590] sm:$0xff]
  %v190 = vld [vmem:[%s0 + $0x598] sm:$0xff]
  %v191 = vld [vmem:[%s0 + $0x5a0] sm:$0xff]
  %v192 = vld [vmem:[%s0 + $0x5a8] sm:$0xff]
  %v193 = vld [vmem:[%s0 + $0x5b0] sm:$0xff]
  %v194 = vld [vmem:[%s0 + $0x5b8] sm:$0xff]
  %v195 = vld [vmem:[%s0 + $0x5c0] sm:$0xff]
  %v196 = vld [vmem:[%s0 + $0x5c8] sm:$0xff]
  %v197 = vld [vmem:[%s0 + $0x5d0] sm:$0xff]
  %v198 = vld [vmem:[%s0 + $0x5d8] sm:$0xff]
  %v199 = vld [vmem:[%s0 + $0x5e0] sm:$0xff]
  %v200 = vld [vmem:[%s0 + $0x5e8] sm:$0xff]
  %v201 = vld [vmem:[%s0 + $0x5f0] sm:$0xff]
  %v202 = vld [vmem:[%s0 + $0x5f8] sm:$0xff]
  %v203 = vld [vmem:[%s0 + $0x600] sm:$0xff]
  %v204 = vld [vmem:[%s0 + $0x608] sm:$0xff]
  %v205 = vld [vmem:[%s0 + $0x610] sm:$0xff]
  %v206 = vld [vmem:[%s0 + $0x618] sm:$0xff]
  %v207 = vld [vmem:[%s0 + $0x620] sm:$0xff]
  %v208 = vld [vmem:[%s0 + $0x628] sm:$0xff]
  %v209 = vld [vmem:[%s0 + $0x630] sm:$0xff]
  %v210 = vld [vmem:[%s0 + $0x638] sm:$0xff]
  %v211 = vld [vmem:[%s0 + $0x640] sm:$0xff]
  %v212 = vld [vmem:[%s0 + $0x648] sm:$0xff]
  %v213 = vld [vmem:[%s0 + $0x650] sm:$0xff]
  %v214 = vld [vmem:[%s0 + $0x658] sm:$0xff]
  %v215 = vld [vmem:[%s0 + $0x660] sm:$0xff]
  %v216 = vld [vmem:[%s0 + $0x668] sm:$0xff]
  %v217 = vld [vmem:[%s0 + $0x670] sm:$0xff]
  %v218 = vld [vmem:[%s0 + $0x678] sm:$0xff]
  %v219 = vld [vmem:[%s0 + $0x680] sm:$0xff]
  %v220 = vld [vmem:[%s0 + $0x688] sm:$0xff]
  %v221 = vld [vmem:[%s0 + $0x690] sm:$0xff]
  %v222 = vld [vmem:[%s0 + $0x698] sm:$0xff]
  %v223 = vld [vmem:[%s0 + $0x6a0] sm:$0xff]
  %v224 = vld [vmem:[%s0 + $0x6a8] sm:$0xff]
  %v225 = vld [vmem:[%s0 + $0x6b0] sm:$0xff]
  %v226 = vld [vmem:[%s0 + $0x6b8] sm:$0xff]
  %v227 = vld [vmem:[%s0 + $0x6c0] sm:$0xff]
  %v228 = vld [vmem:[%s0 + $0x6c8] sm:$0xff]
  %v229 = vld [vmem:[%s0 + $0x6d0] sm:$0xff]
  %v230 = vld [vmem:[%s0 + $0x6d8] sm:$0xff]
  %v231 = vld [vmem:[%s0 + $0x6e0] sm:$0xff]
  %v232 = vld [vmem:[%s0 + $0x6e8] sm:$0xff]
  %v233 = vld [vmem:[%s0 + $0x6f0] sm:$0xff]
  %v234 = vld [vmem:[%s0 + $0x6f8] sm:$0xff]
  %v235 = vld [vmem:[%s0 + $0x700] sm:$0xff]
  %v236 = vld [vmem:[%s0 + $0x708] sm:$0xff]
  %v237 = vld [vmem:[%s0 + $0x710] sm:$0xff]
  %v238 = vld [vmem:[%s0 + $0x718] sm:$0xff]
  %v239 = vld [vmem:[%s0 + $0x720] sm:$0xff]
  %v240 = vld [vmem:[%s0 + $0x728] sm:$0xff]
  %v241 = vld [vmem:[%s0 + $0x730] sm:$0xff]
  %v242 = vld [vmem:[%s1] sm:$0xff]
  %v243 = vld [vmem:[%s1 + $0x8] sm:$0xff]
  %v244 = vld [vmem:[%s1 + $0x10] sm:$0xff]
  %v245 = vld [vmem:[%s1 + $0x18] sm:$0xff]
  %v246 = vld [vmem:[%s1 + $0x20] sm:$0xff]
  %v247 = vld [vmem:[%s1 + $0x28] sm:$0xff]
  %v248 = vld [vmem:[%s1 + $0x30] sm:$0xff]
  %v249 = vld [vmem:[%s1 + $0x38] sm:$0xff]
  %v250 = vld [vmem:[%s1 + $0x40] sm:$0xff]
  %v251 = vld [vmem:[%s1 + $0x48] sm:$0xff]
  %v252 = vld [vmem:[%s1 + $0x50] sm:$0xff]
  %v253 = vld [vmem:[%s1 + $0x58] sm:$0xff]
  %v254 = vld [vmem:[%s1 + $0x60] sm:$0xff]
  %v255 = vld [vmem:[%s1 + $0x68] sm:$0xff]
  %v256 = vld [vmem:[%s1 + $0x70] sm:$0xff]
  %v257 = vld [vmem:[%s1 + $0x78] sm:$0xff]
  %v258 = vld [vmem:[%s1 + $0x80] sm:$0xff]
  %v259 = vld [vmem:[%s1 + $0x88] sm:$0xff]
  %v260 = vld [vmem:[%s1 + $0x90] sm:$0xff]
  %v261 = vld [vmem:[%s1 + $0x98] sm:$0xff]
  %v262 = vld [vmem:[%s1 + $0xa0] sm:$0xff]
  %v263 = vld [vmem:[%s1 + $0xa8] sm:$0xff]
  %v264 = vld [vmem:[%s1 + $0xb0] sm:$0xff]
  %v265 = vld [vmem:[%s1 + $0xb8] sm:$0xff]
  %v266 = vld [vmem:[%s1 + $0xc0] sm:$0xff]
  %v267 = vld [vmem:[%s1 + $0xc8] sm:$0xff]
  %v268 = vld [vmem:[%s1 + $0xd0] sm:$0xff]
  %v269 = vld [vmem:[%s1 + $0xd8] sm:$0xff]
  %v270 = vld [vmem:[%s1 + $0xe0] sm:$0xff]
  %v271 = vld [vmem:[%s1 + $0xe8] sm:$0xff]
  %v272 = vld [vmem:[%s1 + $0xf0] sm:$0xff]
  %v273 = vld [vmem:[%s1 + $0xf8] sm:$0xff]
  %v274 = vld [vmem:[%s1 + $0x100] sm:$0xff]
  %v275 = vld [vmem:[%s1 + $0x108] sm:$0xff]
  %v276 = vld [vmem:[%s1 + $0x110] sm:$0xff]
  %v277 = vld [vmem:[%s1 + $0x118] sm:$0xff]
  %v278 = vld [vmem:[%s1 + $0x120] sm:$0xff]
  %v279 = vld [vmem:[%s1 + $0x128] sm:$0xff]
  %v280 = vld [vmem:[%s1 + $0x130] sm:$0xff]
  %v281 = vld [vmem:[%s1 + $0x138] sm:$0xff]
  %v282 = vld [vmem:[%s1 + $0x140] sm:$0xff]
  %v283 = vld [vmem:[%s1 + $0x148] sm:$0xff]
  %v284 = vld [vmem:[%s1 + $0x150] sm:$0xff]
  %v285 = vld [vmem:[%s1 + $0x158] sm:$0xff]
  %v286 = vld [vmem:[%s1 + $0x160] sm:$0xff]
  %v287 = vld [vmem:[%s1 + $0x168] sm:$0xff]
  %v288 = vld [vmem:[%s1 + $0x170] sm:$0xff]
  %v289 = vld [vmem:[%s1 + $0x178] sm:$0xff]
  %290 = vmatprep.subr.mxu0 0.0
  %291 = vmatpush1.msra.mxu0 %v242
  %292 = vmatprep.subr.mxu0 0.0
  %293 = vmatpush1.msra.mxu0 %v243
  %294 = vmatprep.subr.mxu0 0.0
  %295 = vmatpush1.msra.mxu0 %v244
  %296 = vmatprep.subr.mxu0 0.0
  %297 = vmatpush1.msra.mxu0 %v245
  %298 = vmatprep.subr.mxu0 0.0
  %299 = vmatpush1.msra.mxu0 %v246
  %300 = vmatprep.subr.mxu0 0.0
  %301 = vmatpush1.msra.mxu0 %v247
  %302 = vmatprep.subr.mxu0 0.0
  %303 = vmatpush1.msra.mxu0 %v248
  %304 = vmatprep.subr.mxu0 0.0
  %305 = vmatpush1.msra.mxu0 %v249
  %306 = vmatprep.subr.mxu0 0.0
  %307 = vmatpush1.msra.mxu0 %v250
  %308 = vmatprep.subr.mxu0 0.0
  %309 = vmatpush1.msra.mxu0 %v251
  %310 = vmatprep.subr.mxu0 0.0
  %311 = vmatpush1.msra.mxu0 %v252
  %312 = vmatprep.subr.mxu0 0.0
  %313 = vmatpush1.msra.mxu0 %v253
  %314 = vmatprep.subr.mxu0 0.0
  %315 = vmatpush1.msra.mxu0 %v254
  %316 = vmatprep.subr.mxu0 0.0
  %317 = vmatpush1.msra.mxu0 %v255
  %318 = vmatprep.subr.mxu0 0.0
  %319 = vmatpush1.msra.mxu0 %v256
  %320 = vmatprep.subr.mxu0 0.0
  %321 = vmatpush1.msra.mxu0 %v257
  %322 = vmatprep.subr.mxu0 0.0
  %323 = vmatpush1.msra.mxu0 %v258
  %324 = vmatprep.subr.mxu0 0.0
  %325 = vmatpush1.msra.mxu0 %v259
  %326 = vmatprep.subr.mxu0 0.0
  %327 = vmatpush1.msra.mxu0 %v260
  %328 = vmatprep.subr.mxu0 0.0
  %329 = vmatpush1.msra.mxu0 %v261
  %330 = vmatprep.subr.mxu0 0.0
  %331 = vmatpush1.msra.mxu0 %v262
  %332 = vmatprep.subr.mxu0 0.0
  %333 = vmatpush1.msra.mxu0 %v263
  %334 = vmatprep.subr.mxu0 0.0
  %335 = vmatpush1.msra.mxu0 %v264
  %336 = vmatprep.subr.mxu0 0.0
  %337 = vmatpush1.msra.mxu0 %v265
  %338 = vmatprep.subr.mxu0 0.0
  %339 = vmatpush1.msra.mxu0 %v266
  %340 = vmatprep.subr.mxu0 0.0
  %341 = vmatpush1.msra.mxu0 %v267
  %342 = vmatprep.subr.mxu0 0.0
  %343 = vmatpush1.msra.mxu0 %v268
  %344 = vmatprep.subr.mxu0 0.0
  %345 = vmatpush1.msra.mxu0 %v269
  %346 = vmatprep.subr.mxu0 0.0
  %347 = vmatpush1.msra.mxu0 %v270
  %348 = vmatprep.subr.mxu0 0.0
  %349 = vmatpush1.msra.mxu0 %v271
  %350 = vmatprep.subr.mxu0 0.0
  %351 = vmatpush1.msra.mxu0 %v272
  %352 = vmatprep.subr.mxu0 0.0
  %353 = vmatpush1.msra.mxu0 %v273
  %354 = vmatprep.mubr.f32.mxu0 %v12
  %355 = vmatmul.mubr.f32.gmra.mrb[0].mxu0 %v11
  %v356 = vpop.f32.mrb[0].mxu0
  %v357 = vadd.f32 0.0, %v356
  %v358 = vpop.f32.mrb[0].mxu0
  %359 = vmatprep.mubr.f32.mxu0 %v15
  %360 = vmatmul.mubr.f32.gmra.mrb[0].mxu0 %v14
  %v361 = vpop.f32.mrb[0].mxu0
  %v362 = vadd.f32 0.0, %v361
  %v363 = vpop.f32.mrb[0].mxu0
  %364 = vmatprep.mubr.f32.mxu0 %v18
  %365 = vmatmul.mubr.f32.gmra.mrb[0].mxu0 %v17
  %v366 = vpop.f32.mrb[0].mxu0
  %v367 = vadd.f32 0.0, %v366
  %v368 = vpop.f32.mrb[0].mxu0
  %369 = vmatprep.mubr.f32.mxu0 %v21
  %370 = vmatmul.mubr.f32.gmra.mrb[0].mxu0 %v20
  %v371 = vpop.f32.mrb[0].mxu0
  %v372 = vadd.f32 0.0, %v371
  %v373 = vpop.f32.mrb[0].mxu0
  %374 = vmatprep.mubr.f32.mxu0 %v24
  %375 = vmatmul.mubr.f32.gmra.mrb[0].mxu0 %v23
  %v376 = vpop.f32.mrb[0].mxu0
  %v377 = vadd.f32 0.0, %v376
  %v378 = vpop.f32.mrb[0].mxu0
  %379 = vmatprep.mubr.f32.mxu0 %v27
  %380 = vmatmul.mubr.f32.gmra.mrb[0].mxu0 %v26
  %v381 = vpop.f32.mrb[0].mxu0
  %v382 = vadd.f32 0.0, %v381
  %v383 = vpop.f32.mrb[0].mxu0
  %384 = vmatprep.mubr.f32.mxu0 %v30
  %385 = vmatmul.mubr.f32.gmra.mrb[0].mxu0 %v29
  %v386 = vpop.f32.mrb[0].mxu0
  %v387 = vadd.f32 0.0, %v386
  %v388 = vpop.f32.mrb[0].mxu0
  %389 = vmatprep.mubr.f32.mxu0 %v33
  %390 = vmatmul.mubr.f32.gmra.mrb[0].mxu0 %v32
  %v391 = vpop.f32.mrb[0].mxu0
  %v392 = vadd.f32 0.0, %v391
  %v393 = vpop.f32.mrb[0].mxu0
  %394 = vmatprep.mubr.f32.mxu0 %v36
  %395 = vmatmul.mubr.f32.gmra.mrb[0].mxu0 %v35
  %v396 = vpop.f32.mrb[0].mxu0
  %v397 = vadd.f32 0.0, %v396
  %v398 = vpop.f32.mrb[0].mxu0
  %399 = vmatprep.mubr.f32.mxu0 %v39
  %400 = vmatmul.mubr.f32.gmra.mrb[0].mxu0 %v38
  %v401 = vpop.f32.mrb[0].mxu0
  %v402 = vadd.f32 0.0, %v401
  %v403 = vpop.f32.mrb[0].mxu0
  %404 = vmatprep.mubr.f32.mxu0 %v42
  %405 = vmatmul.mubr.f32.gmra.mrb[0].mxu0 %v41
  %v406 = vpop.f32.mrb[0].mxu0
  %v407 = vadd.f32 0.0, %v406
  %v408 = vpop.f32.mrb[0].mxu0
  %409 = vmatprep.mubr.f32.mxu0 %v45
  %410 = vmatmul.mubr.f32.gmra.mrb[0].mxu0 %v44
  %v411 = vpop.f32.mrb[0].mxu0
  %v412 = vadd.f32 0.0, %v411
  %v413 = vpop.f32.mrb[0].mxu0
  %414 = vmatprep.mubr.f32.mxu0 %v48
  %415 = vmatmul.mubr.f32.gmra.mrb[0].mxu0 %v47
  %v416 = vpop.f32.mrb[0].mxu0
  %v417 = vadd.f32 0.0, %v416
  %v418 = vpop.f32.mrb[0].mxu0
  %419 = vmatprep.mubr.f32.mxu0 %v51
  %420 = vmatmul.mubr.f32.gmra.mrb[0].mxu0 %v50
  %v421 = vpop.f32.mrb[0].mxu0
  %v422 = vadd.f32 0.0, %v421
  %v423 = vpop.f32.mrb[0].mxu0
  %424 = vmatprep.mubr.f32.mxu0 %v54
  %425 = vmatmul.mubr.f32.gmra.mrb[0].mxu0 %v53
  %v426 = vpop.f32.mrb[0].mxu0
  %v427 = vadd.f32 0.0, %v426
  %v428 = vpop.f32.mrb[0].mxu0
  %429 = vmatprep.mubr.f32.mxu0 %v57
  %430 = vmatmul.mubr.f32.gmra.mrb[0].mxu0 %v56
  %v431 = vpop.f32.mrb[0].mxu0
  %v432 = vadd.f32 0.0, %v431
  %v433 = vpop.f32.mrb[0].mxu0
  %434 = vmatprep.mubr.f32.mxu0 %v60
  %435 = vmatmul.mubr.f32.gmra.mrb[0].mxu0 %v59
  %v436 = vpop.f32.mrb[0].mxu0
  %v437 = vadd.f32 0.0, %v436
  %v438 = vpop.f32.mrb[0].mxu0
  %439 = vmatprep.mubr.f32.mxu0 %v63
  %440 = vmatmul.mubr.f32.gmra.mrb[0].mxu0 %v62
  %v441 = vpop.f32.mrb[0].mxu0
  %v442 = vadd.f32 0.0, %v441
  %v443 = vpop.f32.mrb[0].mxu0
  %444 = vmatprep.mubr.f32.mxu0 %v66
  %445 = vmatmul.mubr.f32.gmra.mrb[0].mxu0 %v65
  %v446 = vpop.f32.mrb[0].mxu0
  %v447 = vadd.f32 0.0, %v446
  %v448 = vpop.f32.mrb[0].mxu0
  %449 = vmatprep.mubr.f32.mxu0 %v69
  %450 = vmatmul.mubr.f32.gmra.mrb[0].mxu0 %v68
  %v451 = vpop.f32.mrb[0].mxu0
  %v452 = vadd.f32 0.0, %v451
  %v453 = vpop.f32.mrb[0].mxu0
  %454 = vmatprep.mubr.f32.mxu0 %v72
  %455 = vmatmul.mubr.f32.gmra.mrb[0].mxu0 %v71
  %v456 = vpop.f32.mrb[0].mxu0
  %v457 = vadd.f32 0.0, %v456
  %v458 = vpop.f32.mrb[0].mxu0
  %459 = vmatprep.mubr.f32.mxu0 %v75
  %460 = vmatmul.mubr.f32.gmra.mrb[0].mxu0 %v74
  %v461 = vpop.f32.mrb[0].mxu0
  %v462 = vadd.f32 0.0, %v461
  %v463 = vpop.f32.mrb[0].mxu0
  %464 = vmatprep.mubr.f32.mxu0 %v78
  %465 = vmatmul.mubr.f32.gmra.mrb[0].mxu0 %v77
  %v466 = vpop.f32.mrb[0].mxu0
  %v467 = vadd.f32 0.0, %v466
  %v468 = vpop.f32.mrb[0].mxu0
  %469 = vmatprep.mubr.f32.mxu0 %v81
  %470 = vmatmul.mubr.f32.gmra.mrb[0].mxu0 %v80
  %v471 = vpop.f32.mrb[0].mxu0
  %v472 = vadd.f32 0.0, %v471
  %v473 = vpop.f32.mrb[0].mxu0
  %474 = vmatprep.mubr.f32.mxu0 %v84
  %475 = vmatmul.mubr.f32.gmra.mrb[0].mxu0 %v83
  %v476 = vpop.f32.mrb[0].mxu0
  %v477 = vadd.f32 0.0, %v476
  %v478 = vpop.f32.mrb[0].mxu0
  %479 = vmatprep.mubr.f32.mxu0 %v87
  %480 = vmatmul.mubr.f32.gmra.mrb[0].mxu0 %v86
  %v481 = vpop.f32.mrb[0].mxu0
  %v482 = vadd.f32 0.0, %v481
  %v483 = vpop.f32.mrb[0].mxu0
  %484 = vmatprep.mubr.f32.mxu0 %v90
  %485 = vmatmul.mubr.f32.gmra.mrb[0].mxu0 %v89
  %v486 = vpop.f32.mrb[0].mxu0
  %v487 = vadd.f32 0.0, %v486
  %v488 = vpop.f32.mrb[0].mxu0
  %489 = vmatprep.mubr.f32.mxu0 %v93
  %490 = vmatmul.mubr.f32.gmra.mrb[0].mxu0 %v92
  %v491 = vpop.f32.mrb[0].mxu0
  %v492 = vadd.f32 0.0, %v491
  %v493 = vpop.f32.mrb[0].mxu0
  %494 = vmatprep.mubr.f32.mxu0 %v96
  %495 = vmatmul.mubr.f32.gmra.mrb[0].mxu0 %v95
  %v496 = vpop.f32.mrb[0].mxu0
  %v497 = vadd.f32 0.0, %v496
  %v498 = vpop.f32.mrb[0].mxu0
  %499 = vmatprep.mubr.f32.mxu0 %v99
  %500 = vmatmul.mubr.f32.gmra.mrb[0].mxu0 %v98
  %v501 = vpop.f32.mrb[0].mxu0
  %v502 = vadd.f32 0.0, %v501
  %v503 = vpop.f32.mrb[0].mxu0
  %504 = vmatprep.mubr.f32.mxu0 %v102
  %505 = vmatmul.mubr.f32.gmra.mrb[0].mxu0 %v101
  %v506 = vpop.f32.mrb[0].mxu0
  %v507 = vadd.f32 0.0, %v506
  %v508 = vpop.f32.mrb[0].mxu0
  %509 = vmatprep.mubr.f32.mxu0 %v105
  %510 = vmatmul.mubr.f32.gmra.mrb[0].mxu0 %v104
  %v511 = vpop.f32.mrb[0].mxu0
  %v512 = vadd.f32 0.0, %v511
  %v513 = vpop.f32.mrb[0].mxu0
  %514 = vmatprep.mubr.f32.mxu0 %v108
  %515 = vmatmul.mubr.f32.gmra.mrb[0].mxu0 %v107
  %v516 = vpop.f32.mrb[0].mxu0
  %v517 = vadd.f32 0.0, %v516
  %v518 = vpop.f32.mrb[0].mxu0
  %519 = vmatprep.mubr.f32.mxu0 %v111
  %520 = vmatmul.mubr.f32.gmra.mrb[0].mxu0 %v110
  %v521 = vpop.f32.mrb[0].mxu0
  %v522 = vadd.f32 0.0, %v521
  %v523 = vpop.f32.mrb[0].mxu0
  %524 = vmatprep.mubr.f32.mxu0 %v114
  %525 = vmatmul.mubr.f32.gmra.mrb[0].mxu0 %v113
  %v526 = vpop.f32.mrb[0].mxu0
  %v527 = vadd.f32 0.0, %v526
  %v528 = vpop.f32.mrb[0].mxu0
  %529 = vmatprep.mubr.f32.mxu0 %v117
  %530 = vmatmul.mubr.f32.gmra.mrb[0].mxu0 %v116
  %v531 = vpop.f32.mrb[0].mxu0
  %v532 = vadd.f32 0.0, %v531
  %v533 = vpop.f32.mrb[0].mxu0
  %534 = vmatprep.mubr.f32.mxu0 %v120
  %535 = vmatmul.mubr.f32.gmra.mrb[0].mxu0 %v119
  %v536 = vpop.f32.mrb[0].mxu0
  %v537 = vadd.f32 0.0, %v536
  %v538 = vpop.f32.mrb[0].mxu0
  %539 = vmatprep.mubr.f32.mxu0 %v123
  %540 = vmatmul.mubr.f32.gmra.mrb[0].mxu0 %v122
  %v541 = vpop.f32.mrb[0].mxu0
  %v542 = vadd.f32 0.0, %v541
  %v543 = vpop.f32.mrb[0].mxu0
  %544 = vmatprep.mubr.f32.mxu0 %v126
  %545 = vmatmul.mubr.f32.gmra.mrb[0].mxu0 %v125
  %v546 = vpop.f32.mrb[0].mxu0
  %v547 = vadd.f32 0.0, %v546
  %v548 = vpop.f32.mrb[0].mxu0
  %549 = vmatprep.mubr.f32.mxu0 %v129
  %550 = vmatmul.mubr.f32.gmra.mrb[0].mxu0 %v128
  %v551 = vpop.f32.mrb[0].mxu0
  %v552 = vadd.f32 0.0, %v551
  %v553 = vpop.f32.mrb[0].mxu0
  %554 = vmatprep.mubr.f32.mxu0 %v132
  %555 = vmatmul.mubr.f32.gmra.mrb[0].mxu0 %v131
  %v556 = vpop.f32.mrb[0].mxu0
  %v557 = vadd.f32 0.0, %v556
  %v558 = vpop.f32.mrb[0].mxu0
  %559 = vmatprep.mubr.f32.mxu0 %v135
  %560 = vmatmul.mubr.f32.gmra.mrb[0].mxu0 %v134
  %v561 = vpop.f32.mrb[0].mxu0
  %v562 = vadd.f32 0.0, %v561
  %v563 = vpop.f32.mrb[0].mxu0
  %564 = vmatprep.mubr.f32.mxu0 %v138
  %565 = vmatmul.mubr.f32.gmra.mrb[0].mxu0 %v137
  %v566 = vpop.f32.mrb[0].mxu0
  %v567 = vadd.f32 0.0, %v566
  %v568 = vpop.f32.mrb[0].mxu0
  %569 = vmatprep.mubr.f32.mxu0 %v141
  %570 = vmatmul.mubr.f32.gmra.mrb[0].mxu0 %v140
  %v571 = vpop.f32.mrb[0].mxu0
  %v572 = vadd.f32 0.0, %v571
  %v573 = vpop.f32.mrb[0].mxu0
  %574 = vmatprep.mubr.f32.mxu0 %v144
  %575 = vmatmul.mubr.f32.gmra.mrb[0].mxu0 %v143
  %v576 = vpop.f32.mrb[0].mxu0
  %v577 = vadd.f32 0.0, %v576
  %v578 = vpop.f32.mrb[0].mxu0
  %579 = vmatprep.mubr.f32.mxu0 %v147
  %580 = vmatmul.mubr.f32.gmra.mrb[0].mxu0 %v146
  %v581 = vpop.f32.mrb[0].mxu0
  %v582 = vadd.f32 0.0, %v581
  %v583 = vpop.f32.mrb[0].mxu0
  %584 = vmatprep.mubr.f32.mxu0 %v150
  %585 = vmatmul.mubr.f32.gmra.mrb[0].mxu0 %v149
  %v586 = vpop.f32.mrb[0].mxu0
  %v587 = vadd.f32 0.0, %v586
  %v588 = vpop.f32.mrb[0].mxu0
  %589 = vmatprep.mubr.f32.mxu0 %v153
  %590 = vmatmul.mubr.f32.gmra.mrb[0].mxu0 %v152
  %v591 = vpop.f32.mrb[0].mxu0
  %v592 = vadd.f32 0.0, %v591
  %v593 = vpop.f32.mrb[0].mxu0
  %594 = vmatprep.mubr.f32.mxu0 %v156
  %595 = vmatmul.mubr.f32.gmra.mrb[0].mxu0 %v155
  %v596 = vpop.f32.mrb[0].mxu0
  %v597 = vadd.f32 0.0, %v596
  %v598 = vpop.f32.mrb[0].mxu0
  %599 = vmatprep.mubr.f32.mxu0 %v159
  %600 = vmatmul.mubr.f32.gmra.mrb[0].mxu0 %v158
  %v601 = vpop.f32.mrb[0].mxu0
  %v602 = vadd.f32 0.0, %v601
  %v603 = vpop.f32.mrb[0].mxu0
  %604 = vmatprep.mubr.f32.mxu0 %v162
  %605 = vmatmul.mubr.f32.gmra.mrb[0].mxu0 %v161
  %v606 = vpop.f32.mrb[0].mxu0
  %v607 = vadd.f32 0.0, %v606
  %v608 = vpop.f32.mrb[0].mxu0
  %609 = vmatprep.mubr.f32.mxu0 %v165
  %610 = vmatmul.mubr.f32.gmra.mrb[0].mxu0 %v164
  %v611 = vpop.f32.mrb[0].mxu0
  %v612 = vadd.f32 0.0, %v611
  %v613 = vpop.f32.mrb[0].mxu0
  %614 = vmatprep.mubr.f32.mxu0 %v168
  %615 = vmatmul.mubr.f32.gmra.mrb[0].mxu0 %v167
  %v616 = vpop.f32.mrb[0].mxu0
  %v617 = vadd.f32 0.0, %v616
  %v618 = vpop.f32.mrb[0].mxu0
  %619 = vmatprep.mubr.f32.mxu0 %v171
  %620 = vmatmul.mubr.f32.gmra.mrb[0].mxu0 %v170
  %v621 = vpop.f32.mrb[0].mxu0
  %v622 = vadd.f32 0.0, %v621
  %v623 = vpop.f32.mrb[0].mxu0
  %624 = vmatprep.mubr.f32.mxu0 %v174
  %625 = vmatmul.mubr.f32.gmra.mrb[0].mxu0 %v173
  %v626 = vpop.f32.mrb[0].mxu0
  %v627 = vadd.f32 0.0, %v626
  %v628 = vpop.f32.mrb[0].mxu0
  %629 = vmatprep.mubr.f32.mxu0 %v177
  %630 = vmatmul.mubr.f32.gmra.mrb[0].mxu0 %v176
  %v631 = vpop.f32.mrb[0].mxu0
  %v632 = vadd.f32 0.0, %v631
  %v633 = vpop.f32.mrb[0].mxu0
  %634 = vmatprep.mubr.f32.mxu0 %v180
  %635 = vmatmul.mubr.f32.gmra.mrb[0].mxu0 %v179
  %v636 = vpop.f32.mrb[0].mxu0
  %v637 = vadd.f32 0.0, %v636
  %v638 = vpop.f32.mrb[0].mxu0
  %639 = vmatprep.mubr.f32.mxu0 %v183
  %640 = vmatmul.mubr.f32.gmra.mrb[0].mxu0 %v182
  %v641 = vpop.f32.mrb[0].mxu0
  %v642 = vadd.f32 0.0, %v641
  %v643 = vpop.f32.mrb[0].mxu0
  %644 = vmatprep.mubr.f32.mxu0 %v186
  %645 = vmatmul.mubr.f32.gmra.mrb[0].mxu0 %v185
  %v646 = vpop.f32.mrb[0].mxu0
  %v647 = vadd.f32 0.0, %v646
  %v648 = vpop.f32.mrb[0].mxu0
  %649 = vmatprep.mubr.f32.mxu0 %v189
  %650 = vmatmul.mubr.f32.gmra.mrb[0].mxu0 %v188
  %v651 = vpop.f32.mrb[0].mxu0
  %v652 = vadd.f32 0.0, %v651
  %v653 = vpop.f32.mrb[0].mxu0
  %654 = vmatprep.mubr.f32.mxu0 %v192
  %655 = vmatmul.mubr.f32.gmra.mrb[0].mxu0 %v191
  %v656 = vpop.f32.mrb[0].mxu0
  %v657 = vadd.f32 0.0, %v656
  %v658 = vpop.f32.mrb[0].mxu0
  %659 = vmatprep.mubr.f32.mxu0 %v195
  %660 = vmatmul.mubr.f32.gmra.mrb[0].mxu0 %v194
  %v661 = vpop.f32.mrb[0].mxu0
  %v662 = vadd.f32 0.0, %v661
  %v663 = vpop.f32.mrb[0].mxu0
  %664 = vmatprep.mubr.f32.mxu0 %v198
  %665 = vmatmul.mubr.f32.gmra.mrb[0].mxu0 %v197
  %v666 = vpop.f32.mrb[0].mxu0
  %v667 = vadd.f32 0.0, %v666
  %v668 = vpop.f32.mrb[0].mxu0
  %669 = vmatprep.mubr.f32.mxu0 %v201
  %670 = vmatmul.mubr.f32.gmra.mrb[0].mxu0 %v200
  %v671 = vpop.f32.mrb[0].mxu0
  %v672 = vadd.f32 0.0, %v671
  %v673 = vpop.f32.mrb[0].mxu0
  %674 = vmatprep.mubr.f32.mxu0 %v204
  %675 = vmatmul.mubr.f32.gmra.mrb[0].mxu0 %v203
  %v676 = vpop.f32.mrb[0].mxu0
  %v677 = vadd.f32 0.0, %v676
  %v678 = vpop.f32.mrb[0].mxu0
  %679 = vmatprep.mubr.f32.mxu0 %v207
  %680 = vmatmul.mubr.f32.gmra.mrb[0].mxu0 %v206
  %v681 = vpop.f32.mrb[0].mxu0
  %v682 = vadd.f32 0.0, %v681
  %v683 = vpop.f32.mrb[0].mxu0
  %684 = vmatprep.mubr.f32.mxu0 %v210
  %685 = vmatmul.mubr.f32.gmra.mrb[0].mxu0 %v209
  %v686 = vpop.f32.mrb[0].mxu0
  %v687 = vadd.f32 0.0, %v686
  %v688 = vpop.f32.mrb[0].mxu0
  %689 = vmatprep.mubr.f32.mxu0 %v213
  %690 = vmatmul.mubr.f32.gmra.mrb[0].mxu0 %v212
  %v691 = vpop.f32.mrb[0].mxu0
  %v692 = vadd.f32 0.0, %v691
  %v693 = vpop.f32.mrb[0].mxu0
  %694 = vmatprep.mubr.f32.mxu0 %v216
  %695 = vmatmul.mubr.f32.gmra.mrb[0].mxu0 %v215
  %v696 = vpop.f32.mrb[0].mxu0
  %v697 = vadd.f32 0.0, %v696
  %v698 = vpop.f32.mrb[0].mxu0
  %699 = vmatprep.mubr.f32.mxu0 %v219
  %700 = vmatmul.mubr.f32.gmra.mrb[0].mxu0 %v218
  %v701 = vpop.f32.mrb[0].mxu0
  %v702 = vadd.f32 0.0, %v701
  %v703 = vpop.f32.mrb[0].mxu0
  %704 = vmatprep.mubr.f32.mxu0 %v222
  %705 = vmatmul.mubr.f32.gmra.mrb[0].mxu0 %v221
  %v706 = vpop.f32.mrb[0].mxu0
  %v707 = vadd.f32 0.0, %v706
  %v708 = vpop.f32.mrb[0].mxu0
  %709 = vmatprep.mubr.f32.mxu0 %v225
  %710 = vmatmul.mubr.f32.gmra.mrb[0].mxu0 %v224
  %v711 = vpop.f32.mrb[0].mxu0
  %v712 = vadd.f32 0.0, %v711
  %v713 = vpop.f32.mrb[0].mxu0
  %714 = vmatprep.mubr.f32.mxu0 %v228
  %715 = vmatmul.mubr.f32.gmra.mrb[0].mxu0 %v227
  %v716 = vpop.f32.mrb[0].mxu0
  %v717 = vadd.f32 0.0, %v716
  %v718 = vpop.f32.mrb[0].mxu0
  %719 = vmatprep.mubr.f32.mxu0 %v231
  %720 = vmatmul.mubr.f32.gmra.mrb[0].mxu0 %v230
  %v721 = vpop.f32.mrb[0].mxu0
  %v722 = vadd.f32 0.0, %v721
  %v723 = vpop.f32.mrb[0].mxu0
  %724 = vmatprep.mubr.f32.mxu0 %v234
  %725 = vmatmul.mubr.f32.gmra.mrb[0].mxu0 %v233
  %v726 = vpop.f32.mrb[0].mxu0
  %v727 = vadd.f32 0.0, %v726
  %v728 = vpop.f32.mrb[0].mxu0
  %729 = vmatprep.mubr.f32.mxu0 %v237
  %730 = vmatmul.mubr.f32.gmra.mrb[0].mxu0 %v236
  %v731 = vpop.f32.mrb[0].mxu0
  %v732 = vadd.f32 0.0, %v731
  %v733 = vpop.f32.mrb[0].mxu0
  %734 = vmatprep.mubr.f32.mxu0 %v240
  %735 = vmatmul.mubr.f32.gmra.mrb[0].mxu0 %v239
  %v736 = vpop.f32.mrb[0].mxu0
  %v737 = vadd.f32 0.0, %v736
  %v738 = vpop.f32.mrb[0].mxu0
  %739 = vdwg.mxu0
  %740 = vmatprep.subr.mxu0 0.0
  %741 = vmatpush1.msra.mxu0 %v274
  %742 = vmatprep.subr.mxu0 0.0
  %743 = vmatpush1.msra.mxu0 %v275
  %744 = vmatprep.subr.mxu0 0.0
  %745 = vmatpush1.msra.mxu0 %v276
  %746 = vmatprep.subr.mxu0 0.0
  %747 = vmatpush1.msra.mxu0 %v277
  %748 = vmatprep.subr.mxu0 0.0
  %749 = vmatpush1.msra.mxu0 %v278
  %750 = vmatprep.subr.mxu0 0.0
  %751 = vmatpush1.msra.mxu0 %v279
  %752 = vmatprep.subr.mxu0 0.0
  %753 = vmatpush1.msra.mxu0 %v280
  %754 = vmatprep.subr.mxu0 0.0
  %755 = vmatpush1.msra.mxu0 %v281
  %756 = vmatprep.subr.mxu0 0.0
  %757 = vmatpush1.msra.mxu0 %v282
  %758 = vmatprep.subr.mxu0 0.0
  %759 = vmatpush1.msra.mxu0 %v283
  %760 = vmatprep.subr.mxu0 0.0
  %761 = vmatpush1.msra.mxu0 %v284
  %762 = vmatprep.subr.mxu0 0.0
  %763 = vmatpush1.msra.mxu0 %v285
  %764 = vmatprep.subr.mxu0 0.0
  %765 = vmatpush1.msra.mxu0 %v286
  %766 = vmatprep.subr.mxu0 0.0
  %767 = vmatpush1.msra.mxu0 %v287
  %768 = vmatprep.subr.mxu0 0.0
  %769 = vmatpush1.msra.mxu0 %v288
  %770 = vmatprep.subr.mxu0 0.0
  %771 = vmatpush1.msra.mxu0 %v289
  %772 = vmatprep.subr.mxu0 0.0
  %773 = vmatpush1.msra.mxu0 0.0
  %774 = vmatprep.subr.mxu0 0.0
  %775 = vmatpush1.msra.mxu0 0.0
  %776 = vmatprep.subr.mxu0 0.0
  %777 = vmatpush1.msra.mxu0 0.0
  %778 = vmatprep.subr.mxu0 0.0
  %779 = vmatpush1.msra.mxu0 0.0
  %780 = vmatprep.subr.mxu0 0.0
  %781 = vmatpush1.msra.mxu0 0.0
  %782 = vmatprep.subr.mxu0 0.0
  %783 = vmatpush1.msra.mxu0 0.0
  %784 = vmatprep.subr.mxu0 0.0
  %785 = vmatpush1.msra.mxu0 0.0
  %786 = vmatprep.subr.mxu0 0.0
  %787 = vmatpush1.msra.mxu0 0.0
  %788 = vmatprep.subr.mxu0 0.0
  %789 = vmatpush1.msra.mxu0 0.0
  %790 = vmatprep.subr.mxu0 0.0
  %791 = vmatpush1.msra.mxu0 0.0
  %792 = vmatprep.subr.mxu0 0.0
  %793 = vmatpush1.msra.mxu0 0.0
  %794 = vmatprep.subr.mxu0 0.0
  %795 = vmatpush1.msra.mxu0 0.0
  %796 = vmatprep.subr.mxu0 0.0
  %797 = vmatpush1.msra.mxu0 0.0
  %798 = vmatprep.subr.mxu0 0.0
  %799 = vmatpush1.msra.mxu0 0.0
  %800 = vmatprep.subr.mxu0 0.0
  %801 = vmatpush1.msra.mxu0 0.0
  %802 = vmatprep.subr.mxu0 0.0
  %803 = vmatpush1.msra.mxu0 0.0
  %804 = vmatprep.mubr.f32.mxu0 0.0
  %805 = vmatmul.mubr.f32.gmra.mrb[0].mxu0 %v13
  %v806 = vpop.f32.mrb[0].mxu0
  %v807 = vadd.f32 %v357, %v806
  %v808 = vpop.f32.mrb[0].mxu0
  %809 = vmatprep.mubr.f32.mxu0 0.0
  %810 = vmatmul.mubr.f32.gmra.mrb[0].mxu0 %v16
  %v811 = vpop.f32.mrb[0].mxu0
  %v812 = vadd.f32 %v362, %v811
  %v813 = vpop.f32.mrb[0].mxu0
  %814 = vmatprep.mubr.f32.mxu0 0.0
  %815 = vmatmul.mubr.f32.gmra.mrb[0].mxu0 %v19
  %v816 = vpop.f32.mrb[0].mxu0
  %v817 = vadd.f32 %v367, %v816
  %v818 = vpop.f32.mrb[0].mxu0
  %819 = vmatprep.mubr.f32.mxu0 0.0
  %820 = vmatmul.mubr.f32.gmra.mrb[0].mxu0 %v22
  %v821 = vpop.f32.mrb[0].mxu0
  %v822 = vadd.f32 %v372, %v821
  %v823 = vpop.f32.mrb[0].mxu0
  %824 = vmatprep.mubr.f32.mxu0 0.0
  %825 = vmatmul.mubr.f32.gmra.mrb[0].mxu0 %v25
  %v826 = vpop.f32.mrb[0].mxu0
  %v827 = vadd.f32 %v377, %v826
  %v828 = vpop.f32.mrb[0].mxu0
  %829 = vmatprep.mubr.f32.mxu0 0.0
  %830 = vmatmul.mubr.f32.gmra.mrb[0].mxu0 %v28
  %v831 = vpop.f32.mrb[0].mxu0
  %v832 = vadd.f32 %v382, %v831
  %v833 = vpop.f32.mrb[0].mxu0
  %834 = vmatprep.mubr.f32.mxu0 0.0
  %835 = vmatmul.mubr.f32.gmra.mrb[0].mxu0 %v31
  %v836 = vpop.f32.mrb[0].mxu0
  %v837 = vadd.f32 %v387, %v836
  %v838 = vpop.f32.mrb[0].mxu0
  %839 = vmatprep.mubr.f32.mxu0 0.0
  %840 = vmatmul.mubr.f32.gmra.mrb[0].mxu0 %v34
  %v841 = vpop.f32.mrb[0].mxu0
  %v842 = vadd.f32 %v392, %v841
  %v843 = vpop.f32.mrb[0].mxu0
  %844 = vmatprep.mubr.f32.mxu0 0.0
  %845 = vmatmul.mubr.f32.gmra.mrb[0].mxu0 %v37
  %v846 = vpop.f32.mrb[0].mxu0
  %v847 = vadd.f32 %v397, %v846
  %v848 = vpop.f32.mrb[0].mxu0
  %849 = vmatprep.mubr.f32.mxu0 0.0
  %850 = vmatmul.mubr.f32.gmra.mrb[0].mxu0 %v40
  %v851 = vpop.f32.mrb[0].mxu0
  %v852 = vadd.f32 %v402, %v851
  %v853 = vpop.f32.mrb[0].mxu0
  %854 = vmatprep.mubr.f32.mxu0 0.0
  %855 = vmatmul.mubr.f32.gmra.mrb[0].mxu0 %v43
  %v856 = vpop.f32.mrb[0].mxu0
  %v857 = vadd.f32 %v407, %v856
  %v858 = vpop.f32.mrb[0].mxu0
  %859 = vmatprep.mubr.f32.mxu0 0.0
  %860 = vmatmul.mubr.f32.gmra.mrb[0].mxu0 %v46
  %v861 = vpop.f32.mrb[0].mxu0
  %v862 = vadd.f32 %v412, %v861
  %v863 = vpop.f32.mrb[0].mxu0
  %864 = vmatprep.mubr.f32.mxu0 0.0
  %865 = vmatmul.mubr.f32.gmra.mrb[0].mxu0 %v49
  %v866 = vpop.f32.mrb[0].mxu0
  %v867 = vadd.f32 %v417, %v866
  %v868 = vpop.f32.mrb[0].mxu0
  %869 = vmatprep.mubr.f32.mxu0 0.0
  %870 = vmatmul.mubr.f32.gmra.mrb[0].mxu0 %v52
  %v871 = vpop.f32.mrb[0].mxu0
  %v872 = vadd.f32 %v422, %v871
  %v873 = vpop.f32.mrb[0].mxu0
  %874 = vmatprep.mubr.f32.mxu0 0.0
  %875 = vmatmul.mubr.f32.gmra.mrb[0].mxu0 %v55
  %v876 = vpop.f32.mrb[0].mxu0
  %v877 = vadd.f32 %v427, %v876
  %v878 = vpop.f32.mrb[0].mxu0
  %879 = vmatprep.mubr.f32.mxu0 0.0
  %880 = vmatmul.mubr.f32.gmra.mrb[0].mxu0 %v58
  %v881 = vpop.f32.mrb[0].mxu0
  %v882 = vadd.f32 %v432, %v881
  %v883 = vpop.f32.mrb[0].mxu0
  %884 = vmatprep.mubr.f32.mxu0 0.0
  %885 = vmatmul.mubr.f32.gmra.mrb[0].mxu0 %v61
  %v886 = vpop.f32.mrb[0].mxu0
  %v887 = vadd.f32 %v437, %v886
  %v888 = vpop.f32.mrb[0].mxu0
  %889 = vmatprep.mubr.f32.mxu0 0.0
  %890 = vmatmul.mubr.f32.gmra.mrb[0].mxu0 %v64
  %v891 = vpop.f32.mrb[0].mxu0
  %v892 = vadd.f32 %v442, %v891
  %v893 = vpop.f32.mrb[0].mxu0
  %894 = vmatprep.mubr.f32.mxu0 0.0
  %895 = vmatmul.mubr.f32.gmra.mrb[0].mxu0 %v67
  %v896 = vpop.f32.mrb[0].mxu0
  %v897 = vadd.f32 %v447, %v896
  %v898 = vpop.f32.mrb[0].mxu0
  %899 = vmatprep.mubr.f32.mxu0 0.0
  %900 = vmatmul.mubr.f32.gmra.mrb[0].mxu0 %v70
  %v901 = vpop.f32.mrb[0].mxu0
  %v902 = vadd.f32 %v452, %v901
  %v903 = vpop.f32.mrb[0].mxu0
  %904 = vmatprep.mubr.f32.mxu0 0.0
  %905 = vmatmul.mubr.f32.gmra.mrb[0].mxu0 %v73
  %v906 = vpop.f32.mrb[0].mxu0
  %v907 = vadd.f32 %v457, %v906
  %v908 = vpop.f32.mrb[0].mxu0
  %909 = vmatprep.mubr.f32.mxu0 0.0
  %910 = vmatmul.mubr.f32.gmra.mrb[0].mxu0 %v76
  %v911 = vpop.f32.mrb[0].mxu0
  %v912 = vadd.f32 %v462, %v911
  %v913 = vpop.f32.mrb[0].mxu0
  %914 = vmatprep.mubr.f32.mxu0 0.0
  %915 = vmatmul.mubr.f32.gmra.mrb[0].mxu0 %v79
  %v916 = vpop.f32.mrb[0].mxu0
  %v917 = vadd.f32 %v467, %v916
  %v918 = vpop.f32.mrb[0].mxu0
  %919 = vmatprep.mubr.f32.mxu0 0.0
  %920 = vmatmul.mubr.f32.gmra.mrb[0].mxu0 %v82
  %v921 = vpop.f32.mrb[0].mxu0
  %v922 = vadd.f32 %v472, %v921
  %v923 = vpop.f32.mrb[0].mxu0
  %924 = vmatprep.mubr.f32.mxu0 0.0
  %925 = vmatmul.mubr.f32.gmra.mrb[0].mxu0 %v85
  %v926 = vpop.f32.mrb[0].mxu0
  %v927 = vadd.f32 %v477, %v926
  %v928 = vpop.f32.mrb[0].mxu0
  %929 = vmatprep.mubr.f32.mxu0 0.0
  %930 = vmatmul.mubr.f32.gmra.mrb[0].mxu0 %v88
  %v931 = vpop.f32.mrb[0].mxu0
  %v932 = vadd.f32 %v482, %v931
  %v933 = vpop.f32.mrb[0].mxu0
  %934 = vmatprep.mubr.f32.mxu0 0.0
  %935 = vmatmul.mubr.f32.gmra.mrb[0].mxu0 %v91
  %v936 = vpop.f32.mrb[0].mxu0
  %v937 = vadd.f32 %v487, %v936
  %v938 = vpop.f32.mrb[0].mxu0
  %939 = vmatprep.mubr.f32.mxu0 0.0
  %940 = vmatmul.mubr.f32.gmra.mrb[0].mxu0 %v94
  %v941 = vpop.f32.mrb[0].mxu0
  %v942 = vadd.f32 %v492, %v941
  %v943 = vpop.f32.mrb[0].mxu0
  %944 = vmatprep.mubr.f32.mxu0 0.0
  %945 = vmatmul.mubr.f32.gmra.mrb[0].mxu0 %v97
  %v946 = vpop.f32.mrb[0].mxu0
  %v947 = vadd.f32 %v497, %v946
  %v948 = vpop.f32.mrb[0].mxu0
  %949 = vmatprep.mubr.f32.mxu0 0.0
  %950 = vmatmul.mubr.f32.gmra.mrb[0].mxu0 %v100
  %v951 = vpop.f32.mrb[0].mxu0
  %v952 = vadd.f32 %v502, %v951
  %v953 = vpop.f32.mrb[0].mxu0
  %954 = vmatprep.mubr.f32.mxu0 0.0
  %955 = vmatmul.mubr.f32.gmra.mrb[0].mxu0 %v103
  %v956 = vpop.f32.mrb[0].mxu0
  %v957 = vadd.f32 %v507, %v956
  %v958 = vpop.f32.mrb[0].mxu0
  %959 = vmatprep.mubr.f32.mxu0 0.0
  %960 = vmatmul.mubr.f32.gmra.mrb[0].mxu0 %v106
  %v961 = vpop.f32.mrb[0].mxu0
  %v962 = vadd.f32 %v512, %v961
  %v963 = vpop.f32.mrb[0].mxu0
  %964 = vmatprep.mubr.f32.mxu0 0.0
  %965 = vmatmul.mubr.f32.gmra.mrb[0].mxu0 %v109
  %v966 = vpop.f32.mrb[0].mxu0
  %v967 = vadd.f32 %v517, %v966
  %v968 = vpop.f32.mrb[0].mxu0
  %969 = vmatprep.mubr.f32.mxu0 0.0
  %970 = vmatmul.mubr.f32.gmra.mrb[0].mxu0 %v112
  %v971 = vpop.f32.mrb[0].mxu0
  %v972 = vadd.f32 %v522, %v971
  %v973 = vpop.f32.mrb[0].mxu0
  %974 = vmatprep.mubr.f32.mxu0 0.0
  %975 = vmatmul.mubr.f32.gmra.mrb[0].mxu0 %v115
  %v976 = vpop.f32.mrb[0].mxu0
  %v977 = vadd.f32 %v527, %v976
  %v978 = vpop.f32.mrb[0].mxu0
  %979 = vmatprep.mubr.f32.mxu0 0.0
  %980 = vmatmul.mubr.f32.gmra.mrb[0].mxu0 %v118
  %v981 = vpop.f32.mrb[0].mxu0
  %v982 = vadd.f32 %v532, %v981
  %v983 = vpop.f32.mrb[0].mxu0
  %984 = vmatprep.mubr.f32.mxu0 0.0
  %985 = vmatmul.mubr.f32.gmra.mrb[0].mxu0 %v121
  %v986 = vpop.f32.mrb[0].mxu0
  %v987 = vadd.f32 %v537, %v986
  %v988 = vpop.f32.mrb[0].mxu0
  %989 = vmatprep.mubr.f32.mxu0 0.0
  %990 = vmatmul.mubr.f32.gmra.mrb[0].mxu0 %v124
  %v991 = vpop.f32.mrb[0].mxu0
  %v992 = vadd.f32 %v542, %v991
  %v993 = vpop.f32.mrb[0].mxu0
  %994 = vmatprep.mubr.f32.mxu0 0.0
  %995 = vmatmul.mubr.f32.gmra.mrb[0].mxu0 %v127
  %v996 = vpop.f32.mrb[0].mxu0
  %v997 = vadd.f32 %v547, %v996
  %v998 = vpop.f32.mrb[0].mxu0
  %999 = vmatprep.mubr.f32.mxu0 0.0
  %1000 = vmatmul.mubr.f32.gmra.mrb[0].mxu0 %v130
  %v1001 = vpop.f32.mrb[0].mxu0
  %v1002 = vadd.f32 %v552, %v1001
  %v1003 = vpop.f32.mrb[0].mxu0
  %1004 = vmatprep.mubr.f32.mxu0 0.0
  %1005 = vmatmul.mubr.f32.gmra.mrb[0].mxu0 %v133
  %v1006 = vpop.f32.mrb[0].mxu0
  %v1007 = vadd.f32 %v557, %v1006
  %v1008 = vpop.f32.mrb[0].mxu0
  %1009 = vmatprep.mubr.f32.mxu0 0.0
  %1010 = vmatmul.mubr.f32.gmra.mrb[0].mxu0 %v136
  %v1011 = vpop.f32.mrb[0].mxu0
  %v1012 = vadd.f32 %v562, %v1011
  %v1013 = vpop.f32.mrb[0].mxu0
  %1014 = vmatprep.mubr.f32.mxu0 0.0
  %1015 = vmatmul.mubr.f32.gmra.mrb[0].mxu0 %v139
  %v1016 = vpop.f32.mrb[0].mxu0
  %v1017 = vadd.f32 %v567, %v1016
  %v1018 = vpop.f32.mrb[0].mxu0
  %1019 = vmatprep.mubr.f32.mxu0 0.0
  %1020 = vmatmul.mubr.f32.gmra.mrb[0].mxu0 %v142
  %v1021 = vpop.f32.mrb[0].mxu0
  %v1022 = vadd.f32 %v572, %v1021
  %v1023 = vpop.f32.mrb[0].mxu0
  %1024 = vmatprep.mubr.f32.mxu0 0.0
  %1025 = vmatmul.mubr.f32.gmra.mrb[0].mxu0 %v145
  %v1026 = vpop.f32.mrb[0].mxu0
  %v1027 = vadd.f32 %v577, %v1026
  %v1028 = vpop.f32.mrb[0].mxu0
  %1029 = vmatprep.mubr.f32.mxu0 0.0
  %1030 = vmatmul.mubr.f32.gmra.mrb[0].mxu0 %v148
  %v1031 = vpop.f32.mrb[0].mxu0
  %v1032 = vadd.f32 %v582, %v1031
  %v1033 = vpop.f32.mrb[0].mxu0
  %1034 = vmatprep.mubr.f32.mxu0 0.0
  %1035 = vmatmul.mubr.f32.gmra.mrb[0].mxu0 %v151
  %v1036 = vpop.f32.mrb[0].mxu0
  %v1037 = vadd.f32 %v587, %v1036
  %v1038 = vpop.f32.mrb[0].mxu0
  %1039 = vmatprep.mubr.f32.mxu0 0.0
  %1040 = vmatmul.mubr.f32.gmra.mrb[0].mxu0 %v154
  %v1041 = vpop.f32.mrb[0].mxu0
  %v1042 = vadd.f32 %v592, %v1041
  %v1043 = vpop.f32.mrb[0].mxu0
  %1044 = vmatprep.mubr.f32.mxu0 0.0
  %1045 = vmatmul.mubr.f32.gmra.mrb[0].mxu0 %v157
  %v1046 = vpop.f32.mrb[0].mxu0
  %v1047 = vadd.f32 %v597, %v1046
  %v1048 = vpop.f32.mrb[0].mxu0
  %1049 = vmatprep.mubr.f32.mxu0 0.0
  %1050 = vmatmul.mubr.f32.gmra.mrb[0].mxu0 %v160
  %v1051 = vpop.f32.mrb[0].mxu0
  %v1052 = vadd.f32 %v602, %v1051
  %v1053 = vpop.f32.mrb[0].mxu0
  %1054 = vmatprep.mubr.f32.mxu0 0.0
  %1055 = vmatmul.mubr.f32.gmra.mrb[0].mxu0 %v163
  %v1056 = vpop.f32.mrb[0].mxu0
  %v1057 = vadd.f32 %v607, %v1056
  %v1058 = vpop.f32.mrb[0].mxu0
  %1059 = vmatprep.mubr.f32.mxu0 0.0
  %1060 = vmatmul.mubr.f32.gmra.mrb[0].mxu0 %v166
  %v1061 = vpop.f32.mrb[0].mxu0
  %v1062 = vadd.f32 %v612, %v1061
  %v1063 = vpop.f32.mrb[0].mxu0
  %1064 = vmatprep.mubr.f32.mxu0 0.0
  %1065 = vmatmul.mubr.f32.gmra.mrb[0].mxu0 %v169
  %v1066 = vpop.f32.mrb[0].mxu0
  %v1067 = vadd.f32 %v617, %v1066
  %v1068 = vpop.f32.mrb[0].mxu0
  %1069 = vmatprep.mubr.f32.mxu0 0.0
  %1070 = vmatmul.mubr.f32.gmra.mrb[0].mxu0 %v172
  %v1071 = vpop.f32.mrb[0].mxu0
  %v1072 = vadd.f32 %v622, %v1071
  %v1073 = vpop.f32.mrb[0].mxu0
  %1074 = vmatprep.mubr.f32.mxu0 0.0
  %1075 = vmatmul.mubr.f32.gmra.mrb[0].mxu0 %v175
  %v1076 = vpop.f32.mrb[0].mxu0
  %v1077 = vadd.f32 %v627, %v1076
  %v1078 = vpop.f32.mrb[0].mxu0
  %1079 = vmatprep.mubr.f32.mxu0 0.0
  %1080 = vmatmul.mubr.f32.gmra.mrb[0].mxu0 %v178
  %v1081 = vpop.f32.mrb[0].mxu0
  %v1082 = vadd.f32 %v632, %v1081
  %v1083 = vpop.f32.mrb[0].mxu0
  %1084 = vmatprep.mubr.f32.mxu0 0.0
  %1085 = vmatmul.mubr.f32.gmra.mrb[0].mxu0 %v181
  %v1086 = vpop.f32.mrb[0].mxu0
  %v1087 = vadd.f32 %v637, %v1086
  %v1088 = vpop.f32.mrb[0].mxu0
  %1089 = vmatprep.mubr.f32.mxu0 0.0
  %1090 = vmatmul.mubr.f32.gmra.mrb[0].mxu0 %v184
  %v1091 = vpop.f32.mrb[0].mxu0
  %v1092 = vadd.f32 %v642, %v1091
  %v1093 = vpop.f32.mrb[0].mxu0
  %1094 = vmatprep.mubr.f32.mxu0 0.0
  %1095 = vmatmul.mubr.f32.gmra.mrb[0].mxu0 %v187
  %v1096 = vpop.f32.mrb[0].mxu0
  %v1097 = vadd.f32 %v647, %v1096
  %v1098 = vpop.f32.mrb[0].mxu0
  %1099 = vmatprep.mubr.f32.mxu0 0.0
  %1100 = vmatmul.mubr.f32.gmra.mrb[0].mxu0 %v190
  %v1101 = vpop.f32.mrb[0].mxu0
  %v1102 = vadd.f32 %v652, %v1101
  %v1103 = vpop.f32.mrb[0].mxu0
  %1104 = vmatprep.mubr.f32.mxu0 0.0
  %1105 = vmatmul.mubr.f32.gmra.mrb[0].mxu0 %v193
  %v1106 = vpop.f32.mrb[0].mxu0
  %v1107 = vadd.f32 %v657, %v1106
  %v1108 = vpop.f32.mrb[0].mxu0
  %1109 = vmatprep.mubr.f32.mxu0 0.0
  %1110 = vmatmul.mubr.f32.gmra.mrb[0].mxu0 %v196
  %v1111 = vpop.f32.mrb[0].mxu0
  %v1112 = vadd.f32 %v662, %v1111
  %v1113 = vpop.f32.mrb[0].mxu0
  %1114 = vmatprep.mubr.f32.mxu0 0.0
  %1115 = vmatmul.mubr.f32.gmra.mrb[0].mxu0 %v199
  %v1116 = vpop.f32.mrb[0].mxu0
  %v1117 = vadd.f32 %v667, %v1116
  %v1118 = vpop.f32.mrb[0].mxu0
  %1119 = vmatprep.mubr.f32.mxu0 0.0
  %1120 = vmatmul.mubr.f32.gmra.mrb[0].mxu0 %v202
  %v1121 = vpop.f32.mrb[0].mxu0
  %v1122 = vadd.f32 %v672, %v1121
  %v1123 = vpop.f32.mrb[0].mxu0
  %1124 = vmatprep.mubr.f32.mxu0 0.0
  %1125 = vmatmul.mubr.f32.gmra.mrb[0].mxu0 %v205
  %v1126 = vpop.f32.mrb[0].mxu0
  %v1127 = vadd.f32 %v677, %v1126
  %v1128 = vpop.f32.mrb[0].mxu0
  %1129 = vmatprep.mubr.f32.mxu0 0.0
  %1130 = vmatmul.mubr.f32.gmra.mrb[0].mxu0 %v208
  %v1131 = vpop.f32.mrb[0].mxu0
  %v1132 = vadd.f32 %v682, %v1131
  %v1133 = vpop.f32.mrb[0].mxu0
  %1134 = vmatprep.mubr.f32.mxu0 0.0
  %1135 = vmatmul.mubr.f32.gmra.mrb[0].mxu0 %v211
  %v1136 = vpop.f32.mrb[0].mxu0
  %v1137 = vadd.f32 %v687, %v1136
  %v1138 = vpop.f32.mrb[0].mxu0
  %1139 = vmatprep.mubr.f32.mxu0 0.0
  %1140 = vmatmul.mubr.f32.gmra.mrb[0].mxu0 %v214
  %v1141 = vpop.f32.mrb[0].mxu0
  %v1142 = vadd.f32 %v692, %v1141
  %v1143 = vpop.f32.mrb[0].mxu0
  %1144 = vmatprep.mubr.f32.mxu0 0.0
  %1145 = vmatmul.mubr.f32.gmra.mrb[0].mxu0 %v217
  %v1146 = vpop.f32.mrb[0].mxu0
  %v1147 = vadd.f32 %v697, %v1146
  %v1148 = vpop.f32.mrb[0].mxu0
  %1149 = vmatprep.mubr.f32.mxu0 0.0
  %1150 = vmatmul.mubr.f32.gmra.mrb[0].mxu0 %v220
  %v1151 = vpop.f32.mrb[0].mxu0
  %v1152 = vadd.f32 %v702, %v1151
  %v1153 = vpop.f32.mrb[0].mxu0
  %1154 = vmatprep.mubr.f32.mxu0 0.0
  %1155 = vmatmul.mubr.f32.gmra.mrb[0].mxu0 %v223
  %v1156 = vpop.f32.mrb[0].mxu0
  %v1157 = vadd.f32 %v707, %v1156
  %v1158 = vpop.f32.mrb[0].mxu0
  %1159 = vmatprep.mubr.f32.mxu0 0.0
  %1160 = vmatmul.mubr.f32.gmra.mrb[0].mxu0 %v226
  %v1161 = vpop.f32.mrb[0].mxu0
  %v1162 = vadd.f32 %v712, %v1161
  %v1163 = vpop.f32.mrb[0].mxu0
  %1164 = vmatprep.mubr.f32.mxu0 0.0
  %1165 = vmatmul.mubr.f32.gmra.mrb[0].mxu0 %v229
  %v1166 = vpop.f32.mrb[0].mxu0
  %v1167 = vadd.f32 %v717, %v1166
  %v1168 = vpop.f32.mrb[0].mxu0
  %1169 = vmatprep.mubr.f32.mxu0 0.0
  %1170 = vmatmul.mubr.f32.gmra.mrb[0].mxu0 %v232
  %v1171 = vpop.f32.mrb[0].mxu0
  %v1172 = vadd.f32 %v722, %v1171
  %v1173 = vpop.f32.mrb[0].mxu0
  %1174 = vmatprep.mubr.f32.mxu0 0.0
  %1175 = vmatmul.mubr.f32.gmra.mrb[0].mxu0 %v235
  %v1176 = vpop.f32.mrb[0].mxu0
  %v1177 = vadd.f32 %v727, %v1176
  %v1178 = vpop.f32.mrb[0].mxu0
  %1179 = vmatprep.mubr.f32.mxu0 0.0
  %1180 = vmatmul.mubr.f32.gmra.mrb[0].mxu0 %v238
  %v1181 = vpop.f32.mrb[0].mxu0
  %v1182 = vadd.f32 %v732, %v1181
  %v1183 = vpop.f32.mrb[0].mxu0
  %1184 = vmatprep.mubr.f32.mxu0 0.0
  %1185 = vmatmul.mubr.f32.gmra.mrb[0].mxu0 %v241
  %v1186 = vpop.f32.mrb[0].mxu0
  %v1187 = vadd.f32 %v737, %v1186
  %v1188 = vpop.f32.mrb[0].mxu0
  %1189 = vdwg.mxu0
  %1190 = vst [vmem:[%s2] sm:$0xff] %v807
  %1191 = vst [vmem:[%s2 + $0x8] sm:$0xff] %v812
  %1192 = vst [vmem:[%s2 + $0x10] sm:$0xff] %v817
  %1193 = vst [vmem:[%s2 + $0x18] sm:$0xff] %v822
  %1194 = vst [vmem:[%s2 + $0x20] sm:$0xff] %v827
  %1195 = vst [vmem:[%s2 + $0x28] sm:$0xff] %v832
  %1196 = vst [vmem:[%s2 + $0x30] sm:$0xff] %v837
  %1197 = vst [vmem:[%s2 + $0x38] sm:$0xff] %v842
  %1198 = vst [vmem:[%s2 + $0x40] sm:$0xff] %v847
  %1199 = vst [vmem:[%s2 + $0x48] sm:$0xff] %v852
  %1200 = vst [vmem:[%s2 + $0x50] sm:$0xff] %v857
  %1201 = vst [vmem:[%s2 + $0x58] sm:$0xff] %v862
  %1202 = vst [vmem:[%s2 + $0x60] sm:$0xff] %v867
  %1203 = vst [vmem:[%s2 + $0x68] sm:$0xff] %v872
  %1204 = vst [vmem:[%s2 + $0x70] sm:$0xff] %v877
  %1205 = vst [vmem:[%s2 + $0x78] sm:$0xff] %v882
  %1206 = vst [vmem:[%s2 + $0x80] sm:$0xff] %v887
  %1207 = vst [vmem:[%s2 + $0x88] sm:$0xff] %v892
  %1208 = vst [vmem:[%s2 + $0x90] sm:$0xff] %v897
  %1209 = vst [vmem:[%s2 + $0x98] sm:$0xff] %v902
  %1210 = vst [vmem:[%s2 + $0xa0] sm:$0xff] %v907
  %1211 = vst [vmem:[%s2 + $0xa8] sm:$0xff] %v912
  %1212 = vst [vmem:[%s2 + $0xb0] sm:$0xff] %v917
  %1213 = vst [vmem:[%s2 + $0xb8] sm:$0xff] %v922
  %1214 = vst [vmem:[%s2 + $0xc0] sm:$0xff] %v927
  %1215 = vst [vmem:[%s2 + $0xc8] sm:$0xff] %v932
  %1216 = vst [vmem:[%s2 + $0xd0] sm:$0xff] %v937
  %1217 = vst [vmem:[%s2 + $0xd8] sm:$0xff] %v942
  %1218 = vst [vmem:[%s2 + $0xe0] sm:$0xff] %v947
  %1219 = vst [vmem:[%s2 + $0xe8] sm:$0xff] %v952
  %1220 = vst [vmem:[%s2 + $0xf0] sm:$0xff] %v957
  %1221 = vst [vmem:[%s2 + $0xf8] sm:$0xff] %v962
  %1222 = vst [vmem:[%s2 + $0x100] sm:$0xff] %v967
  %1223 = vst [vmem:[%s2 + $0x108] sm:$0xff] %v972
  %1224 = vst [vmem:[%s2 + $0x110] sm:$0xff] %v977
  %1225 = vst [vmem:[%s2 + $0x118] sm:$0xff] %v982
  %1226 = vst [vmem:[%s2 + $0x120] sm:$0xff] %v987
  %1227 = vst [vmem:[%s2 + $0x128] sm:$0xff] %v992
  %1228 = vst [vmem:[%s2 + $0x130] sm:$0xff] %v997
  %1229 = vst [vmem:[%s2 + $0x138] sm:$0xff] %v1002
  %1230 = vst [vmem:[%s2 + $0x140] sm:$0xff] %v1007
  %1231 = vst [vmem:[%s2 + $0x148] sm:$0xff] %v1012
  %1232 = vst [vmem:[%s2 + $0x150] sm:$0xff] %v1017
  %1233 = vst [vmem:[%s2 + $0x158] sm:$0xff] %v1022
  %1234 = vst [vmem:[%s2 + $0x160] sm:$0xff] %v1027
  %1235 = vst [vmem:[%s2 + $0x168] sm:$0xff] %v1032
  %1236 = vst [vmem:[%s2 + $0x170] sm:$0xff] %v1037
  %1237 = vst [vmem:[%s2 + $0x178] sm:$0xff] %v1042
  %1238 = vst [vmem:[%s2 + $0x180] sm:$0xff] %v1047
  %1239 = vst [vmem:[%s2 + $0x188] sm:$0xff] %v1052
  %1240 = vst [vmem:[%s2 + $0x190] sm:$0xff] %v1057
  %1241 = vst [vmem:[%s2 + $0x198] sm:$0xff] %v1062
  %1242 = vst [vmem:[%s2 + $0x1a0] sm:$0xff] %v1067
  %1243 = vst [vmem:[%s2 + $0x1a8] sm:$0xff] %v1072
  %1244 = vst [vmem:[%s2 + $0x1b0] sm:$0xff] %v1077
  %1245 = vst [vmem:[%s2 + $0x1b8] sm:$0xff] %v1082
  %1246 = vst [vmem:[%s2 + $0x1c0] sm:$0xff] %v1087
  %1247 = vst [vmem:[%s2 + $0x1c8] sm:$0xff] %v1092
  %1248 = vst [vmem:[%s2 + $0x1d0] sm:$0xff] %v1097
  %1249 = vst [vmem:[%s2 + $0x1d8] sm:$0xff] %v1102
  %1250 = vst [vmem:[%s2 + $0x1e0] sm:$0xff] %v1107
  %1251 = vst [vmem:[%s2 + $0x1e8] sm:$0xff] %v1112
  %1252 = vst [vmem:[%s2 + $0x1f0] sm:$0xff] %v1117
  %1253 = vst [vmem:[%s2 + $0x1f8] sm:$0xff] %v1122
  %1254 = vst [vmem:[%s2 + $0x200] sm:$0xff] %v1127
  %1255 = vst [vmem:[%s2 + $0x208] sm:$0xff] %v1132
  %1256 = vst [vmem:[%s2 + $0x210] sm:$0xff] %v1137
  %1257 = vst [vmem:[%s2 + $0x218] sm:$0xff] %v1142
  %1258 = vst [vmem:[%s2 + $0x220] sm:$0xff] %v1147
  %1259 = vst [vmem:[%s2 + $0x228] sm:$0xff] %v1152
  %1260 = vst [vmem:[%s2 + $0x230] sm:$0xff] %v1157
  %1261 = vst [vmem:[%s2 + $0x238] sm:$0xff] %v1162
  %1262 = vst [vmem:[%s2 + $0x240] sm:$0xff] %v1167
  %1263 = vst [vmem:[%s2 + $0x248] sm:$0xff] %v1172
  %1264 = vst [vmem:[%s2 + $0x250] sm:$0xff] %v1177
  %1265 = vst [vmem:[%s2 + $0x258] sm:$0xff] %v1182
  %1266 = vst [vmem:[%s2 + $0x260] sm:$0xff] %v1187
  // Predicated region
  $region10: #{conv_transpose2d_pallas.1} parent=0 // pred_check
    _
  $region11: #{conv_transpose2d_pallas.1} parent=0 // pred_check_branch
    %1268 = sbr.rel (0) target = $region13
  $region12: #{conv_transpose2d_pallas.1} parent=0 // pred_region
    _
  $region13: #{conv_transpose2d_pallas.1} parent=0 // pred_fallthru
    _
  // Predicated region
  $region14: #{conv_transpose2d_pallas.1} parent=0 // pred_check
    _
  $region15: #{conv_transpose2d_pallas.1} parent=0 // pred_check_branch
    %1270 = sbr.rel (0) target = $region17
  $region16: #{conv_transpose2d_pallas.1} parent=0 // pred_region
    _
  $region17: #{conv_transpose2d_pallas.1} parent=0 // pred_fallthru
    _

</llo_original>
